<compile_context>
chip_gen: v6e
topology: v6e:2x2x1
jax: 0.10.0
libtpu: 0.0.40
codegen_flags: <defaults>
</compile_context>

<pallas_src>
import functools

import jax
import jax.numpy as jnp
from jax import lax
from jax.experimental import pallas as pl
from jax.experimental.pallas import tpu as pltpu


def _audio_processor_kernel(x_ref, o_ref, *, target_rms, inv_samples):
    """x_ref: (Bb, C, R, 128) zero-padded input block; o_ref: (Bb, R, 128)."""
    x = x_ref[...]
    if x.dtype != jnp.float32:
        x = x.astype(jnp.float32)

    # Mono conversion: mean over channels (plain VPU adds over dense slabs,
    # no sublane-sparse intermediates).
    mono = jnp.mean(x, axis=1)                                    # (Bb, R, 128)

    # One pass of reductions over the dense (R, 128) slab.  The wrapper's zero
    # pad contributes 0 to sum(x^2) and never wins max|x|, so dividing by the
    # ORIGINAL sample count gives the true mean over S.
    mean_sq = jnp.sum(mono * mono, axis=(1, 2), keepdims=True) * inv_samples
    max_abs = jnp.max(jnp.abs(mono), axis=(1, 2), keepdims=True)  # (Bb, 1, 1)

    # rms = max(sqrt(mean_sq), 1e-8) == sqrt(max(mean_sq, 1e-16)); rsqrt on
    # the EUP replaces the sqrt + divide chain.
    norm_scale = target_rms * lax.rsqrt(jnp.maximum(mean_sq, 1e-16))
    # Peak after normalization (norm_scale >= 0); clamp so |out| <= 1.
    peak = jnp.maximum(norm_scale * max_abs, 1e-8)
    clamp = jnp.where(peak > 1.0, 1.0 / peak, jnp.ones_like(peak))
    final_scale = norm_scale * clamp                               # (Bb, 1, 1)

    # Single S-wide multiply; full-vreg unmasked stores.  The pad region is
    # already zero and stays zero, so no second store is needed.
    o_ref[...] = (mono * final_scale).astype(o_ref.dtype)


def audio_processor_forward(audio: jax.Array,
                            target_loudness: float = -24.0,
                            hop_length: int = 768) -> jax.Array:
    """JAX/Pallas equivalent of AudioProcessor.forward.

    audio: float32 [B, C, S]  ->  float32 [B, 1, T], T = ceil(S/hop)*hop.
    """
    B, C, S = audio.shape
    T = pl.cdiv(S, hop_length) * hop_length      # module's padded output length
    T_lane = pl.cdiv(T, 128) * 128               # lane-aligned working length
    R = T_lane // 128                            # sample axis -> (R, 128)
    target_rms = float(10.0 ** (target_loudness / 20.0))

    # Layout plumbing (wrapper side): zero-pad S -> T_lane once and split the
    # sample axis so it spans sublanes AND lanes.  The reshape is a free
    # row-major view.  (hop_length=768 is 6*128, so normally T_lane == T.)
    x = audio.astype(jnp.float32)
    if T_lane != S:
        x = jnp.pad(x, ((0, 0), (0, 0), (0, T_lane - S)))
    x = x.reshape(B, C, R, 128)

    # Honest per-step VMEM accounting: the minor-2 dim (R) pads to a multiple
    # of 8 sublanes and Pallas double-buffers every BlockSpec by default.
    rows = pl.cdiv(R, 8) * 8
    bytes_per_batch = 2 * (C + 1) * rows * 128 * 4   # x2 dbl-buffer, in + out
    vmem_budget = 20 << 20                           # headroom under the 32 MiB limit below
    fit_b = max(1, vmem_budget // bytes_per_batch)
    # >= 2 grid programs whenever B >= 2 so v7x's two TensorCores both work.
    block_b = int(min(max(1, pl.cdiv(B, 2)), fit_b))
    grid = (pl.cdiv(B, block_b),)
    # TODO(synk): if bytes_per_batch > vmem_budget (multi-minute clips), switch
    # to the streaming S-tiled two-pass reduction described at the top.

    kernel = functools.partial(_audio_processor_kernel,
                               target_rms=target_rms,
                               inv_samples=1.0 / float(S))

    out = pl.pallas_call(
        kernel,
        out_shape=jax.ShapeDtypeStruct((B, R, 128), jnp.float32),
        grid_spec=pltpu.PrefetchScalarGridSpec(
            num_scalar_prefetch=0,
            grid=grid,
            in_specs=[pl.BlockSpec((block_b, C, R, 128),
                                   lambda b: (b, 0, 0, 0))],
            out_specs=pl.BlockSpec((block_b, R, 128), lambda b: (b, 0, 0)),
        ),
        compiler_params=pltpu.CompilerParams(
            dimension_semantics=("parallel",),
            vmem_limit_bytes=32 << 20),
    )(x)

    # (B, R, 128) -> (B, 1, T_lane) -> trim to the module's target length T.
    out = out.reshape(B, 1, T_lane)
    if T_lane != T:
        out = out[:, :, :T]
    return out


def _reference_forward(audio, target_loudness=-24.0, hop_length=768):
    # Pure-JAX reference mirroring the PyTorch module.
    mono = jnp.mean(audio, axis=1, keepdims=True)
    rms = jnp.sqrt(jnp.mean(mono ** 2, axis=-1, keepdims=True))
    rms = jnp.maximum(rms, 1e-8)
    target_rms = 10.0 ** (target_loudness / 20.0)
    out = mono * (target_rms / rms)
    max_val = jnp.max(jnp.abs(out), axis=-1, keepdims=True)
    max_val = jnp.maximum(max_val, 1e-8)
    scale = jnp.where(max_val > 1.0, 1.0 / max_val, jnp.ones_like(max_val))
    out = out * scale
    S = out.shape[-1]
    T = (S + hop_length - 1) // hop_length * hop_length
    return jnp.pad(out, ((0, 0), (0, 0), (0, T - S)))


if __name__ == "__main__":
    # AudioProcessor has no learned parameters; nothing to initialize.
    key = jax.random.PRNGKey(0)
    B, C, S = 2, 4, 1000          # hop_length=768 -> padded length 1536
    audio = jax.random.normal(key, (B, C, S), dtype=jnp.float32) * 2.0

    out = audio_processor_forward(audio)
    out = jax.block_until_ready(out)

    ref = _reference_forward(audio)
    assert out.shape == (B, 1, 1536), out.shape
    assert jnp.allclose(out, ref, atol=1e-5, rtol=1e-5), \
        float(jnp.max(jnp.abs(out - ref)))

    print("KERNEL_OK")
</pallas_src>

<mosaic_0001>
module attributes {stable_mosaic.version = 11 : i64} {
  func.func @_audio_processor_kernel(%arg0: i32, %arg1: memref<1x4x12x128xf32, #tpu.memory_space<vmem>>, %arg2: memref<1x12x128xf32, #tpu.memory_space<vmem>>) attributes {dimension_semantics = [#tpu.dimension_semantics<parallel>], iteration_bounds = array<i64: 2>, scalar_prefetch = 0 : i64, scratch_operands = 0 : i64, tpu.core_type = #tpu.core_type<tc>, window_params = [{transform_indices = @transform_0, window_bounds = array<i64: 1, 4, 12, 128>}, {transform_indices = @transform_1, window_bounds = array<i64: 1, 12, 128>}]} {
    %c0 = arith.constant 0 : index
    %c0_0 = arith.constant 0 : index
    %c0_1 = arith.constant 0 : index
    %c0_2 = arith.constant 0 : index
    %0 = vector.load %arg1[%c0, %c0_0, %c0_1, %c0_2] : memref<1x4x12x128xf32, #tpu.memory_space<vmem>>, vector<1x4x12x128xf32>
    %cst = arith.constant dense<0.000000e+00> : vector<1x12x128xf32>
    %1 = vector.multi_reduction <add>, %0, %cst [1] : vector<1x4x12x128xf32> to vector<1x12x128xf32>
    %cst_3 = arith.constant 4.000000e+00 : f32
    %2 = vector.broadcast %cst_3 : f32 to vector<1x12x128xf32>
    %3 = arith.divf %1, %2 : vector<1x12x128xf32>
    %4 = arith.mulf %3, %3 : vector<1x12x128xf32>
    %cst_4 = arith.constant dense<0.000000e+00> : vector<1xf32>
    %5 = vector.multi_reduction <add>, %4, %cst_4 [1, 2] : vector<1x12x128xf32> to vector<1xf32>
    %6 = vector.shape_cast %5 : vector<1xf32> to vector<1x1x1xf32>
    %cst_5 = arith.constant 1.000000e-03 : f32
    %7 = vector.broadcast %cst_5 : f32 to vector<1x1x1xf32>
    %8 = arith.mulf %6, %7 : vector<1x1x1xf32>
    %9 = math.absf %3 : vector<1x12x128xf32>
    %cst_6 = arith.constant dense<0xFF800000> : vector<1xf32>
    %10 = vector.multi_reduction <maximumf>, %9, %cst_6 [1, 2] : vector<1x12x128xf32> to vector<1xf32>
    %11 = vector.shape_cast %10 : vector<1xf32> to vector<1x1x1xf32>
    %cst_7 = arith.constant 1.000000e-16 : f32
    %12 = vector.broadcast %cst_7 : f32 to vector<1x1x1xf32>
    %13 = arith.maximumf %8, %12 : vector<1x1x1xf32>
    %14 = math.rsqrt %13 : vector<1x1x1xf32>
    %cst_8 = arith.constant 0.0630957335 : f32
    %15 = vector.broadcast %cst_8 : f32 to vector<1x1x1xf32>
    %16 = arith.mulf %15, %14 : vector<1x1x1xf32>
    %17 = arith.mulf %16, %11 : vector<1x1x1xf32>
    %cst_9 = arith.constant 9.99999993E-9 : f32
    %18 = vector.broadcast %cst_9 : f32 to vector<1x1x1xf32>
    %19 = arith.maximumf %17, %18 : vector<1x1x1xf32>
    %cst_10 = arith.constant 1.000000e+00 : f32
    %20 = vector.broadcast %cst_10 : f32 to vector<1x1x1xf32>
    %21 = arith.cmpf ogt, %19, %20 : vector<1x1x1xf32>
    %cst_11 = arith.constant 1.000000e+00 : f32
    %22 = vector.broadcast %cst_11 : f32 to vector<1x1x1xf32>
    %23 = arith.divf %22, %19 : vector<1x1x1xf32>
    %cst_12 = arith.constant 1.000000e+00 : f32
    %24 = vector.broadcast %cst_12 : f32 to vector<1x1x1xf32>
    %25 = arith.select %21, %23, %24 : vector<1x1x1xi1>, vector<1x1x1xf32>
    %26 = arith.mulf %16, %25 : vector<1x1x1xf32>
    %27 = vector.broadcast %26 : vector<1x1x1xf32> to vector<1x12x128xf32>
    %28 = arith.mulf %3, %27 : vector<1x12x128xf32>
    %c0_13 = arith.constant 0 : index
    %c0_14 = arith.constant 0 : index
    %c0_15 = arith.constant 0 : index
    %29 = vector.load %arg2[%c0_13, %c0_14, %c0_15] : memref<1x12x128xf32, #tpu.memory_space<vmem>>, vector<1x12x128xf32>
    tpu.vector_store %arg2[%c0_13, %c0_14, %c0_15], %28 {strides = array<i32>} : memref<1x12x128xf32, #tpu.memory_space<vmem>>, vector<1x12x128xf32>,
    return
  }
  func.func @transform_0(%arg0: i32) -> (i32, i32, i32, i32) {
    %c0_i32 = arith.constant 0 : i32
    %c0_i32_0 = arith.constant 0 : i32
    %c0_i32_1 = arith.constant 0 : i32
    %c0_i32_2 = arith.constant 0 : i32
    return %arg0, %c0_i32, %c0_i32_0, %c0_i32_1 : i32, i32, i32, i32
  }
  func.func @transform_1(%arg0: i32) -> (i32, i32, i32) {
    %c0_i32 = arith.constant 0 : i32
    %c0_i32_0 = arith.constant 0 : i32
    %c0_i32_1 = arith.constant 0 : i32
    return %arg0, %c0_i32, %c0_i32_0 : i32, i32, i32
  }
}

</mosaic_0001>

<llo_original>
// kernel: tpu_custom_call.1
$region0: #{tpu_custom_call.1}
  #allocation0 [shape = 'u32[]', space=smem, size = 0x4, offset = 0x4, fixed_abs, tag = 'smem constant byte address 0x4 - core index']
  #allocation1 [shape = 'u32[144,128]{1,0:T(1,128)}', space=vmem, size = 0x12000, scoped, tag = 'internal scratch']
  %s0 = inlined_call_operand.vmem [shape: f32[2,4,12,128], index: 0, kind: input, shape index: {}]
  %s1 = inlined_call_operand.vmem [shape: f32[2,12,128], index: 1, kind: output, shape index: {}]
  %s2 = sld [smem:[#allocation0]]
  $region37: #{tpu_custom_call.1} parent=0
    _
  %s4 = ssub.s32 1, %s2
  %s5 = scalar_select 0, %s4, %s2
  loop: start=0, step=1, limit=4
  $region2: #{tpu_custom_call.1} parent=0 // loop_pre_header
    _
  $region3: #{tpu_custom_call.1} parent=0 // loop_header
    %s7 = sphi 0, %s11
    %p8 = scmp.ge.s32.totalorder %s7, 4
    %s17 = sphi 0, %s19
    %s20 = sphi 0, %s17
    %s21 = sphi 0, %s20
    %s37 = sphi 0, %s21
    %s43 = sphi 0, %s45
    %s46 = sphi 0, %s43
    %s47 = sphi 0, %s46
    %s63 = sphi 0, %s47
  $region4: #{tpu_custom_call.1} parent=0 // loop_header_branch
    %10 = sbr.rel (%p8) target = $region8
  $region5: #{tpu_custom_call.1} parent=0 // loop_body
    %s12 = ssub.s32 %s7, 1
    %s13 = ssub.s32 %s7, 2
    %s14 = sadd.s32 %s7, 1
    %s15 = ssub.s32 %s7, %s14
    %p16 = scmp.eq.s32.totalorder %s15, 0
    %s18 = sadd.s32 %s17, 1
    %s19 = scalar_select %p16, %s17, %s18
    %p22 = pneg %p16
    %p23 = scmp.eq.s32.totalorder %s7, 1
    %p24 = por %p22, %p23
    %p25 = scmp.ne.s32.totalorder %s17, %s20
    %p26 = scmp.eq.s32.totalorder %s7, 0
    %p27 = por %p25, %p26
    %p28 = scmp.ne.s32.totalorder %s17, %s20
    %p29 = scmp.eq.s32.totalorder %s12, 1
    %p30 = por %p28, %p29
    %p31 = scmp.ne.s32.totalorder %s20, %s21
    %p32 = scmp.eq.s32.totalorder %s12, 0
    %p33 = por %p31, %p32
    %p34 = scmp.ne.s32.totalorder %s20, %s21
    %p35 = scmp.eq.s32.totalorder %s13, 1
    %p36 = por %p34, %p35
    %p38 = scmp.ne.s32.totalorder %s21, %s37
    %p39 = scmp.eq.s32.totalorder %s13, 0
    %p40 = por %p38, %p39
    %s41 = ssub.s32 %s7, %s14
    %p42 = scmp.eq.s32.totalorder %s41, 0
    %s44 = sadd.s32 %s43, 1
    %s45 = scalar_select %p42, %s43, %s44
    %p48 = pneg %p42
    %p49 = scmp.eq.s32.totalorder %s7, 1
    %p50 = por %p48, %p49
    %p51 = scmp.ne.s32.totalorder %s43, %s46
    %p52 = scmp.eq.s32.totalorder %s7, 0
    %p53 = por %p51, %p52
    %p54 = scmp.ne.s32.totalorder %s43, %s46
    %p55 = scmp.eq.s32.totalorder %s12, 1
    %p56 = por %p54, %p55
    %p57 = scmp.ne.s32.totalorder %s46, %s47
    %p58 = scmp.eq.s32.totalorder %s12, 0
    %p59 = por %p57, %p58
    %p60 = scmp.ne.s32.totalorder %s46, %s47
    %p61 = scmp.eq.s32.totalorder %s13, 1
    %p62 = por %p60, %p61
    %p64 = scmp.ne.s32.totalorder %s47, %s63
    %p65 = scmp.eq.s32.totalorder %s13, 0
    %p66 = por %p64, %p65
    %p67 = scmp.le.s32.totalorder 1, %s7
    %p68 = scmp.lt.s32.totalorder %s7, 3
    %p69 = pnand %p67, %p68
    %p70 = pneg %p69
    // Predicated region
    $region9: #{tpu_custom_call.1} parent=5 // pred_check
      _
    $region10: #{tpu_custom_call.1} parent=5 // pred_check_branch
      %72 = sbr.rel (%p69) target = $region12
    $region11: #{tpu_custom_call.1} parent=5 // pred_region
      %s73 = ssub.s32 %s7, 1
    $region12: #{tpu_custom_call.1} parent=5 // pred_fallthru
      _
    %p74 = scmp.lt.s32.totalorder %s7, 2
    // Predicated region
    $region13: #{tpu_custom_call.1} parent=5 // pred_check
      %p75 = pneg %p74
    $region14: #{tpu_custom_call.1} parent=5 // pred_check_branch
      %77 = sbr.rel (%p75) target = $region16
    $region15: #{tpu_custom_call.1} parent=5 // pred_region
      // Predicated region
      $region17: #{tpu_custom_call.1} parent=15 // pred_check
        %p78 = pneg %p27
      $region18: #{tpu_custom_call.1} parent=15 // pred_check_branch
        %80 = sbr.rel (%p78) target = $region20
      $region19: #{tpu_custom_call.1} parent=15 // pred_region
        %p81 = scmp.lt.s32.totalorder %s7, 1
        %s82 = scalar_select %p81, %s7, 1
        %s83 = smul.addr %s82, 8
        %s84 = smul.addr %s83, 8
        %s85 = scalar_lea.vmem %s0, %s84
      $region20: #{tpu_custom_call.1} parent=15 // pred_fallthru
        _
    $region16: #{tpu_custom_call.1} parent=5 // pred_fallthru
      _
    %p86 = scmp.le.s32.totalorder 1, %s7
    %p87 = scmp.lt.s32.totalorder %s7, 3
    %p88 = pnand %p86, %p87
    %p89 = pneg %p88
    // Predicated region
    $region21: #{tpu_custom_call.1} parent=5 // pred_check
      _
    $region22: #{tpu_custom_call.1} parent=5 // pred_check_branch
      %91 = sbr.rel (%p88) target = $region24
    $region23: #{tpu_custom_call.1} parent=5 // pred_region
      %s92 = ssub.s32 %s7, 1
      %p93 = scmp.lt.s32.totalorder %s12, 1
      %s94 = scalar_select %p93, %s12, 1
      %s95 = smul.addr %s94, 8
      %s96 = smul.addr %s95, 8
      %s97 = scalar_lea.vmem %s0, %s96
      %p98 = pneg %p33
      %p99 = pneg %p30
      %p100 = pneg %p59
      %p101 = pneg %p56
      %p102 = scmp.lt.s32.totalorder %s12, 1
      %s103 = scalar_select %p102, %s12, 1
      %s104 = smul.addr %s103, 2
      %s105 = smul.addr %s104, 8
      %s106 = scalar_lea.vmem %s1, %s105
      %p107 = scmp.lt.s32.totalorder %s12, 1
      %s108 = scalar_select %p107, %s12, 1
      %s109 = smul.addr %s108, 8
      %s110 = smul.addr %s109, 8
      %s111 = scalar_lea.vmem %s0, %s110
      %p112 = scmp.lt.s32.totalorder %s12, 1
      %s113 = scalar_select %p112, %s12, 1
      %s114 = smul.addr %s113, 2
      %s115 = smul.addr %s114, 8
      %s116 = scalar_lea.vmem %s1, %s115
      %v117 = vld [vmem:[%s111] sm:$0xff]
      %v118 = vld [vmem:[%s111 + $0x8] sm:$0xf]
      %v119 = vld [vmem:[%s111 + $0x10] sm:$0xff]
      %v120 = vld [vmem:[%s111 + $0x18] sm:$0xf]
      %v121 = vld [vmem:[%s111 + $0x20] sm:$0xff]
      %v122 = vld [vmem:[%s111 + $0x28] sm:$0xf]
      %v123 = vld [vmem:[%s111 + $0x30] sm:$0xff]
      %v124 = vld [vmem:[%s111 + $0x38] sm:$0xf]
      %v125 = vadd.f32 %v117, %v119
      %v126 = vadd.f32 %v125, %v121
      %v127 = vadd.f32 %v126, %v123
      %vm128 = vcmask 1043456
      %v129 = vsel %vm128, %v118, 0.0
      %v130 = vsel %vm128, %v120, 0.0
      %v131 = vadd.f32 %v129, %v130
      %v132 = vsel %vm128, %v122, 0.0
      %v133 = vadd.f32 %v131, %v132
      %v134 = vsel %vm128, %v124, 0.0
      %v135 = vadd.f32 %v133, %v134
      %v136 = vrcp.pop 4.0
      %v137 = vmul.f32 %v127, %v136
      %v138 = vmul.f32 %v135, %v136
      %v139 = vmul.f32 %v137, %v137
      %v140 = vmul.f32 %v138, %v138
      %v141 = vsel %vm128, %v140, 0.0
      %v142 = vadd.f32 %v139, %v141
      %143 = vadd.xlane.f32.xlu0 %v142
      %v144 = vpop.xlane.xlu0 %143
      %v145 = vrot.slane %v144, 4
      %v146 = vadd.f32 %v144, %v145
      %v147 = vrot.slane %v146, 2
      %v148 = vadd.f32 %v146, %v147
      %v149 = vrot.slane %v148, 1
      %v150 = vadd.f32 %v148, %v149
      %v151 = vmul.f32 %v150, 0.001
      %v152 = vand.u32 2147483647, %v137
      %v153 = vand.u32 2147483647, %v138
      %v154 = vsel %vm128, %v153, -inf
      %v155 = vmax.f32 %v152, %v154
      %156 = vmax.xlane.f32.xlu0 %v155
      %v157 = vpop.xlane.xlu0 %156
      %v158 = vrot.slane %v157, 4
      %v159 = vmax.f32 %v157, %v158
      %v160 = vrot.slane %v159, 2
      %v161 = vmax.f32 %v159, %v160
      %v162 = vrot.slane %v161, 1
      %v163 = vmax.f32 %v161, %v162
      %v164 = vmax.f32 %v151, 1e-16
      %v165 = vrsqrt.pop %v164
      %v166 = vmul.f32 %v165, 0.06309573
      %v167 = vmul.f32 %v166, %v163
      %v168 = vmax.f32 %v167, 1e-08
      %vm169 = vcmp.gt.f32.partialorder %v168, 1.0
      %v170 = vrcp.pop %v168
      %v171 = vmul.f32 1.0, %v170
      %v172 = vsel %vm169, %v171, 1.0
      %v173 = vmul.f32 %v166, %v172
      %v174 = vmul.f32 %v137, %v173
      %v175 = vmul.f32 %v138, %v173
      %176 = vst [vmem:[%s116] sm:$0xff] %v174
      %177 = vst [vmem:[%s116 + $0x8] sm:$0xf] %v175
      %p178 = scmp.lt.s32.totalorder %s12, 1
      %s179 = scalar_select %p178, %s12, 1
      %s180 = smul.addr %s179, 2
      %s181 = smul.addr %s180, 8
      %s182 = scalar_lea.vmem %s1, %s181
      // Predicated region
      $region25: #{tpu_custom_call.1} parent=23 // pred_check
        %p183 = pneg %p56
      $region26: #{tpu_custom_call.1} parent=23 // pred_check_branch
        %185 = sbr.rel (%p183) target = $region28
      $region27: #{tpu_custom_call.1} parent=23 // pred_region
        _
      $region28: #{tpu_custom_call.1} parent=23 // pred_fallthru
        _
    $region24: #{tpu_custom_call.1} parent=5 // pred_fallthru
      _
    %p186 = scmp.le.s32.totalorder 2, %s7
    // Predicated region
    $region29: #{tpu_custom_call.1} parent=5 // pred_check
      %p187 = pneg %p186
    $region30: #{tpu_custom_call.1} parent=5 // pred_check_branch
      %189 = sbr.rel (%p187) target = $region32
    $region31: #{tpu_custom_call.1} parent=5 // pred_region
      %s190 = ssub.s32 %s7, 2
      // Predicated region
      $region33: #{tpu_custom_call.1} parent=31 // pred_check
        %p191 = pneg %p62
      $region34: #{tpu_custom_call.1} parent=31 // pred_check_branch
        %193 = sbr.rel (%p191) target = $region36
      $region35: #{tpu_custom_call.1} parent=31 // pred_region
        %p194 = scmp.lt.s32.totalorder %s13, 1
        %s195 = scalar_select %p194, %s13, 1
        %s196 = smul.addr %s195, 2
        %s197 = smul.addr %s196, 8
        %s198 = scalar_lea.vmem %s1, %s197
      $region36: #{tpu_custom_call.1} parent=31 // pred_fallthru
        _
    $region32: #{tpu_custom_call.1} parent=5 // pred_fallthru
      _
  $region6: #{tpu_custom_call.1} parent=0 // loop_footer
    %s11 = sadd.s32 1, %s7
  $region7: #{tpu_custom_call.1} parent=0 // loop_footer_branch
    %6 = sbr.rel target = $region3
  $region8: #{tpu_custom_call.1} parent=0 // loop_exit
    _

</llo_original>
